<compile_context>
chip_gen: v5e
topology: v5e:2x2
jax: 0.10.0
libtpu: 0.0.40
codegen_flags: <defaults>
</compile_context>

<pallas_src>
import jax
import jax.numpy as jnp
from jax import lax
from jax.experimental import pallas as pl
from jax.experimental.pallas import tpu as pltpu


K = 3                       # first conv-transpose kernel size
C_IN = 6
C_MID = 64
C_OUT = 3
KPATCH = K * K * C_IN       # 54 real patch rows
KP = 56                     # sublane-padded patch rows: 54 data + 1 bias + 1 zero
COUT_PAD = 8                # output channels padded to one sublane group
TM_MAX = 2048               # max output pixels (lanes) per grid block


def fused_kernel(pt_ref, w1t_ref, w2t_ref, b2_ref, o_ref):
    # pt_ref : (KP, TM)          patches^T; row 54 is the all-ones bias row
    # w1t_ref: (C_MID, KP)       flipped ConvT(6,64,3) weight^T, col 54 = b1
    # w2t_ref: (COUT_PAD, C_MID) 1x1 ConvT(64,3,1) weight^T, rows 3..7 zero
    # b2_ref : (COUT_PAD, 1)     rows 3..7 zero
    # o_ref  : (COUT_PAD, TM)    only sublanes 0..2 are meaningful
    h = jnp.dot(w1t_ref[...], pt_ref[...], preferred_element_type=jnp.float32)
    h = jnp.maximum(h, 0.0)                                   # torch.relu
    o_ref[...] = (jnp.dot(w2t_ref[...], h, preferred_element_type=jnp.float32)
                  + b2_ref[...])


def model_forward(x_nchw, w1, b1, w2, b2):
    """Replicates:
         v1 = ConvTranspose2d(6, 64, 3, stride=1, padding=0)(x)
         v2 = relu(v1)
         v3 = ConvTranspose2d(64, 3, 1, stride=1, padding=0)(v2)
    ConvTranspose2d (stride=1, padding=0, kernel K) == full correlation of the
    spatially flipped kernel over the input padded by K-1 on each side.
    """
    N, C, H, W = x_nchw.shape
    Ho, Wo = H + K - 1, W + K - 1
    npix = Ho * Wo
    dt = x_nchw.dtype

    # Adaptive lane tile: single block for small images, 2048 for large ones.
    tm = min(((npix + 127) // 128) * 128, TM_MAX)
    n_blocks = pl.cdiv(npix, tm)
    npix_pad = n_blocks * tm

    # ---- im2col, directly in NCHW, patch index order (kh, kw, c) ----------
    xpad = jnp.pad(x_nchw, ((0, 0), (0, 0), (K - 1, K - 1), (K - 1, K - 1)))
    rows = [xpad[:, :, kh:kh + Ho, kw:kw + Wo].reshape(N, C, npix)
            for kh in range(K) for kw in range(K)]
    rows.append(jnp.ones((N, 1, npix), dt))                  # b1 fold row
    rows.append(jnp.zeros((N, KP - KPATCH - 1, npix), dt))   # sublane pad
    pt = jnp.concatenate(rows, axis=1)                        # (N, KP, npix)
    pt = jnp.pad(pt, ((0, 0), (0, 0), (0, npix_pad - npix)))  # lane pad only

    # ConvTranspose weight (in=6, out=64, 3, 3): flip spatially, reorder to
    # (kh, kw, in, out), flatten to (54, 64), append b1 row + zero row, T.
    w1_flip = w1[:, :, ::-1, ::-1]
    w1_mat = jnp.transpose(w1_flip, (2, 3, 0, 1)).reshape(KPATCH, C_MID)
    w1_aug = jnp.concatenate(
        [w1_mat, b1.reshape(1, C_MID),
         jnp.zeros((KP - KPATCH - 1, C_MID), w1_mat.dtype)], axis=0)
    w1t = w1_aug.T                                            # (C_MID, KP)

    # 1x1 transposed conv == channel matmul; pad out-channels 3 -> 8 sublanes.
    w2t = jnp.pad(w2[:, :, 0, 0].T, ((0, COUT_PAD - C_OUT), (0, 0)))
    b2c = jnp.pad(b2.reshape(C_OUT, 1), ((0, COUT_PAD - C_OUT), (0, 0)))

    flops = 2 * N * npix_pad * (KP * C_MID + C_MID * COUT_PAD)
    bytes_accessed = 4 * (N * npix_pad * (KP + COUT_PAD)
                          + C_MID * KP + COUT_PAD * (C_MID + 1))

    out = pl.pallas_call(
        fused_kernel,
        out_shape=jax.ShapeDtypeStruct((N, COUT_PAD, npix_pad), jnp.float32),
        grid=(N, n_blocks),
        in_specs=[
            pl.BlockSpec((None, KP, tm), lambda n, j: (n, 0, j)),      # P^T
            pl.BlockSpec((C_MID, KP), lambda n, j: (0, 0)),            # W1^T
            pl.BlockSpec((COUT_PAD, C_MID), lambda n, j: (0, 0)),      # W2^T
            pl.BlockSpec((COUT_PAD, 1), lambda n, j: (0, 0)),          # b2
        ],
        out_specs=pl.BlockSpec((None, COUT_PAD, tm), lambda n, j: (n, 0, j)),
        compiler_params=pltpu.CompilerParams(
            dimension_semantics=("parallel", "parallel")),
        cost_estimate=pl.CostEstimate(
            flops=flops, transcendentals=0, bytes_accessed=bytes_accessed),
    )(pt, w1t, w2t, b2c)

    # (N, 8, npix_pad) -> (N, 3, Ho, Wo); already channels-first, no transpose.
    return out[:, :C_OUT, :npix].reshape(N, C_OUT, Ho, Wo)


def reference_forward(x_nchw, w1, b1, w2, b2):
    """Pure-XLA reference (conv-transpose as correlation of flipped kernel)."""
    v1 = lax.conv_general_dilated(
        x_nchw, w1[:, :, ::-1, ::-1], window_strides=(1, 1),
        padding=[(K - 1, K - 1), (K - 1, K - 1)],
        dimension_numbers=('NCHW', 'IOHW', 'NCHW'))
    v1 = v1 + b1[None, :, None, None]
    v2 = jnp.maximum(v1, 0.0)
    v3 = lax.conv_general_dilated(
        v2, w2, window_strides=(1, 1), padding=[(0, 0), (0, 0)],
        dimension_numbers=('NCHW', 'IOHW', 'NCHW'))
    return v3 + b2[None, :, None, None]


if __name__ == "__main__":
    key = jax.random.PRNGKey(0)
    k_x, k_w1, k_b1, k_w2, k_b2 = jax.random.split(key, 5)

    # Small shapes consistent with the module (in_channels must be 6).
    N, H, W = 2, 16, 16
    x = jax.random.normal(k_x, (N, C_IN, H, W), dtype=jnp.float32)

    # Deterministic PyTorch-style uniform init (+/- 1/sqrt(fan_in)).
    bound1 = 1.0 / jnp.sqrt(C_IN * K * K)
    w1 = jax.random.uniform(k_w1, (C_IN, C_MID, K, K), jnp.float32,
                            -bound1, bound1)
    b1 = jax.random.uniform(k_b1, (C_MID,), jnp.float32, -bound1, bound1)
    bound2 = 1.0 / jnp.sqrt(C_MID)
    w2 = jax.random.uniform(k_w2, (C_MID, C_OUT, 1, 1), jnp.float32,
                            -bound2, bound2)
    b2 = jax.random.uniform(k_b2, (C_OUT,), jnp.float32, -bound2, bound2)

    model_fn = jax.jit(model_forward)
    y = model_fn(x, w1, b1, w2, b2)
    jax.block_until_ready(y)
    assert y.shape == (N, C_OUT, H + K - 1, W + K - 1), y.shape

    y_ref = reference_forward(x, w1, b1, w2, b2)
    err = jnp.max(jnp.abs(y - y_ref))
    assert err < 1e-3, f"max abs error {err}"

    print("KERNEL_OK")
</pallas_src>

<mosaic_0001>
module attributes {stable_mosaic.version = 11 : i64} {
  func.func @fused_kernel(%arg0: i32, %arg1: i32, %arg2: memref<1x56x384xf32, #tpu.memory_space<vmem>>, %arg3: memref<64x56xf32, #tpu.memory_space<vmem>>, %arg4: memref<8x64xf32, #tpu.memory_space<vmem>>, %arg5: memref<8x1xf32, #tpu.memory_space<vmem>>, %arg6: memref<1x8x384xf32, #tpu.memory_space<vmem>>) attributes {dimension_semantics = [#tpu.dimension_semantics<parallel>, #tpu.dimension_semantics<parallel>], iteration_bounds = array<i64: 2, 1>, scalar_prefetch = 0 : i64, scratch_operands = 0 : i64, tpu.core_type = #tpu.core_type<tc>, window_params = [{transform_indices = @transform_0, window_bounds = array<i64: 1, 56, 384>}, {pipeline_mode = #tpu.pipeline_mode<synchronous>, transform_indices = @transform_1, window_bounds = array<i64: 64, 56>}, {pipeline_mode = #tpu.pipeline_mode<synchronous>, transform_indices = @transform_2, window_bounds = array<i64: 8, 64>}, {pipeline_mode = #tpu.pipeline_mode<synchronous>, transform_indices = @transform_3, window_bounds = array<i64: 8, 1>}, {transform_indices = @transform_4, window_bounds = array<i64: 1, 8, 384>}]} {
    %c0 = arith.constant 0 : index
    %c0_0 = arith.constant 0 : index
    %0 = vector.load %arg3[%c0, %c0_0] : memref<64x56xf32, #tpu.memory_space<vmem>>, vector<64x56xf32>
    %c0_1 = arith.constant 0 : index
    %c0_2 = arith.constant 0 : index
    %c0_3 = arith.constant 0 : index
    %1 = vector.load %arg2[%c0_1, %c0_2, %c0_3] : memref<1x56x384xf32, #tpu.memory_space<vmem>>, vector<1x56x384xf32>
    %2 = vector.shape_cast %1 : vector<1x56x384xf32> to vector<56x384xf32>
    %cst = arith.constant dense<0.000000e+00> : vector<64x384xf32>
    %3 = tpu.matmul %0, %2, %cst {dimension_numbers = #tpu.dot_dimension_numbers<[1], [0], [0], [1], [0, 0, 1, 1], [], []>} : vector<64x56xf32>, vector<56x384xf32>, vector<64x384xf32> -> vector<64x384xf32>
    %cst_4 = arith.constant 0.000000e+00 : f32
    %4 = vector.broadcast %cst_4 : f32 to vector<64x384xf32>
    %5 = arith.maximumf %3, %4 : vector<64x384xf32>
    %c0_5 = arith.constant 0 : index
    %c0_6 = arith.constant 0 : index
    %6 = vector.load %arg4[%c0_5, %c0_6] : memref<8x64xf32, #tpu.memory_space<vmem>>, vector<8x64xf32>
    %cst_7 = arith.constant dense<0.000000e+00> : vector<8x384xf32>
    %7 = tpu.matmul %6, %5, %cst_7 {dimension_numbers = #tpu.dot_dimension_numbers<[1], [0], [0], [1], [0, 0, 1, 1], [], []>} : vector<8x64xf32>, vector<64x384xf32>, vector<8x384xf32> -> vector<8x384xf32>
    %c0_8 = arith.constant 0 : index
    %c0_9 = arith.constant 0 : index
    %8 = vector.load %arg5[%c0_8, %c0_9] : memref<8x1xf32, #tpu.memory_space<vmem>>, vector<8x1xf32>
    %9 = vector.broadcast %8 : vector<8x1xf32> to vector<8x384xf32>
    %10 = arith.addf %7, %9 : vector<8x384xf32>
    %c0_10 = arith.constant 0 : index
    %c0_11 = arith.constant 0 : index
    %c0_12 = arith.constant 0 : index
    %11 = vector.load %arg6[%c0_10, %c0_11, %c0_12] : memref<1x8x384xf32, #tpu.memory_space<vmem>>, vector<1x8x384xf32>
    %12 = vector.shape_cast %11 : vector<1x8x384xf32> to vector<8x384xf32>
    %13 = vector.shape_cast %10 : vector<8x384xf32> to vector<1x8x384xf32>
    tpu.vector_store %arg6[%c0_10, %c0_11, %c0_12], %13 {strides = array<i32>} : memref<1x8x384xf32, #tpu.memory_space<vmem>>, vector<1x8x384xf32>,
    return
  }
  func.func @transform_0(%arg0: i32, %arg1: i32) -> (i32, i32, i32) {
    %c0_i32 = arith.constant 0 : i32
    %c0_i32_0 = arith.constant 0 : i32
    return %arg0, %c0_i32, %arg1 : i32, i32, i32
  }
  func.func @transform_1(%arg0: i32, %arg1: i32) -> (i32, i32) {
    %c0_i32 = arith.constant 0 : i32
    %c0_i32_0 = arith.constant 0 : i32
    %c0_i32_1 = arith.constant 0 : i32
    return %c0_i32, %c0_i32_0 : i32, i32
  }
  func.func @transform_2(%arg0: i32, %arg1: i32) -> (i32, i32) {
    %c0_i32 = arith.constant 0 : i32
    %c0_i32_0 = arith.constant 0 : i32
    %c0_i32_1 = arith.constant 0 : i32
    return %c0_i32, %c0_i32_0 : i32, i32
  }
  func.func @transform_3(%arg0: i32, %arg1: i32) -> (i32, i32) {
    %c0_i32 = arith.constant 0 : i32
    %c0_i32_0 = arith.constant 0 : i32
    %c0_i32_1 = arith.constant 0 : i32
    return %c0_i32, %c0_i32_0 : i32, i32
  }
  func.func @transform_4(%arg0: i32, %arg1: i32) -> (i32, i32, i32) {
    %c0_i32 = arith.constant 0 : i32
    %c0_i32_0 = arith.constant 0 : i32
    return %arg0, %c0_i32, %arg1 : i32, i32, i32
  }
}

</mosaic_0001>

<llo_original>
// kernel: model_forward.1
$region0: #{model_forward.1}
  #allocation0 [shape = 'u32[]', space=smem, size = 0x4, offset = 0x4, fixed_abs, tag = 'smem constant byte address 0x4 - core index']
  #allocation1 [shape = 'u32[72,128]{1,0:T(1,128)}', space=vmem, size = 0x9000, scoped, tag = 'internal scratch']
  %s0 = inlined_call_operand.vmem [shape: f32[2,56,384], index: 0, kind: input, shape index: {}]
  %s1 = inlined_call_operand.vmem [shape: f32[64,56], index: 1, kind: input, shape index: {}]
  %s2 = inlined_call_operand.vmem [shape: f32[8,64], index: 2, kind: input, shape index: {}]
  %s3 = inlined_call_operand.vmem [shape: f32[8,1], index: 3, kind: input, shape index: {}]
  %s4 = inlined_call_operand.vmem [shape: f32[2,8,384], index: 4, kind: output, shape index: {}]
  %s5 = sld [smem:[#allocation0]]
  $region49: #{model_forward.1} parent=0
    _
  %s7 = ssub.s32 1, %s5
  %s8 = scalar_select 0, %s7, %s5
  loop: start=0, step=1, limit=4
  $region2: #{model_forward.1} parent=0 // loop_pre_header
    _
  $region3: #{model_forward.1} parent=0 // loop_header
    %s10 = sphi 0, %s14
    %p11 = scmp.ge.s32.totalorder %s10, 4
    %s17 = sphi 0, %s29
    %s18 = sphi 0, %s25
    %s19 = sphi 0, %s17
    %s20 = sphi 0, %s18
    %s21 = sphi 0, %s19
    %s22 = sphi 0, %s20
    %s34 = sphi 0, %s36
    %s37 = sphi 0, %s34
    %s38 = sphi 0, %s37
    %s54 = sphi 0, %s38
    %s58 = sphi 0, %s58
    %s60 = sphi 0, %s58
    %s61 = sphi 0, %s60
    %s75 = sphi 0, %s61
    %s79 = sphi 0, %s79
    %s81 = sphi 0, %s79
    %s82 = sphi 0, %s81
    %s96 = sphi 0, %s82
    %s100 = sphi 0, %s100
    %s102 = sphi 0, %s100
    %s103 = sphi 0, %s102
    %s117 = sphi 0, %s103
    %s125 = sphi 0, %s127
    %s128 = sphi 0, %s125
    %s129 = sphi 0, %s128
    %s145 = sphi 0, %s129
  $region4: #{model_forward.1} parent=0 // loop_header_branch
    %13 = sbr.rel (%p11) target = $region8
  $region5: #{model_forward.1} parent=0 // loop_body
    %s15 = ssub.s32 %s10, 1
    %s16 = ssub.s32 %s10, 2
    %s23 = sadd.s32 1, %s18
    %p24 = scmp.ge.s32.totalorder %s23, 1
    %s25 = scalar_select %p24, 0, %s23
    %s26 = sadd.s32 1, %s17
    %s27 = scalar_select %p24, %s26, %s17
    %p28 = scmp.ge.s32.totalorder %s27, 2
    %s29 = scalar_select %p28, 0, %s27
    %s30 = ssub.s32 %s17, %s29
    %s31 = ssub.s32 %s18, %s25
    %s32 = sor.u32 %s30, %s31
    %p33 = scmp.eq.s32.totalorder %s32, 0
    %s35 = sadd.s32 %s34, 1
    %s36 = scalar_select %p33, %s34, %s35
    %p39 = pneg %p33
    %p40 = scmp.eq.s32.totalorder %s10, 1
    %p41 = por %p39, %p40
    %p42 = scmp.ne.s32.totalorder %s34, %s37
    %p43 = scmp.eq.s32.totalorder %s10, 0
    %p44 = por %p42, %p43
    %p45 = scmp.ne.s32.totalorder %s34, %s37
    %p46 = scmp.eq.s32.totalorder %s15, 1
    %p47 = por %p45, %p46
    %p48 = scmp.ne.s32.totalorder %s37, %s38
    %p49 = scmp.eq.s32.totalorder %s15, 0
    %p50 = por %p48, %p49
    %p51 = scmp.ne.s32.totalorder %s37, %s38
    %p52 = scmp.eq.s32.totalorder %s16, 1
    %p53 = por %p51, %p52
    %p55 = scmp.ne.s32.totalorder %s38, %s54
    %p56 = scmp.eq.s32.totalorder %s16, 0
    %p57 = por %p55, %p56
    %s59 = sadd.s32 %s58, 1
    %p62 = scmp.eq.s32.totalorder %s10, 1
    %p63 = scmp.ne.s32.totalorder %s58, %s60
    %p64 = scmp.eq.s32.totalorder %s10, 0
    %p65 = por %p63, %p64
    %p66 = scmp.ne.s32.totalorder %s58, %s60
    %p67 = scmp.eq.s32.totalorder %s15, 1
    %p68 = por %p66, %p67
    %p69 = scmp.ne.s32.totalorder %s60, %s61
    %p70 = scmp.eq.s32.totalorder %s15, 0
    %p71 = por %p69, %p70
    %p72 = scmp.ne.s32.totalorder %s60, %s61
    %p73 = scmp.eq.s32.totalorder %s16, 1
    %p74 = por %p72, %p73
    %p76 = scmp.ne.s32.totalorder %s61, %s75
    %p77 = scmp.eq.s32.totalorder %s16, 0
    %p78 = por %p76, %p77
    %s80 = sadd.s32 %s79, 1
    %p83 = scmp.eq.s32.totalorder %s10, 1
    %p84 = scmp.ne.s32.totalorder %s79, %s81
    %p85 = scmp.eq.s32.totalorder %s10, 0
    %p86 = por %p84, %p85
    %p87 = scmp.ne.s32.totalorder %s79, %s81
    %p88 = scmp.eq.s32.totalorder %s15, 1
    %p89 = por %p87, %p88
    %p90 = scmp.ne.s32.totalorder %s81, %s82
    %p91 = scmp.eq.s32.totalorder %s15, 0
    %p92 = por %p90, %p91
    %p93 = scmp.ne.s32.totalorder %s81, %s82
    %p94 = scmp.eq.s32.totalorder %s16, 1
    %p95 = por %p93, %p94
    %p97 = scmp.ne.s32.totalorder %s82, %s96
    %p98 = scmp.eq.s32.totalorder %s16, 0
    %p99 = por %p97, %p98
    %s101 = sadd.s32 %s100, 1
    %p104 = scmp.eq.s32.totalorder %s10, 1
    %p105 = scmp.ne.s32.totalorder %s100, %s102
    %p106 = scmp.eq.s32.totalorder %s10, 0
    %p107 = por %p105, %p106
    %p108 = scmp.ne.s32.totalorder %s100, %s102
    %p109 = scmp.eq.s32.totalorder %s15, 1
    %p110 = por %p108, %p109
    %p111 = scmp.ne.s32.totalorder %s102, %s103
    %p112 = scmp.eq.s32.totalorder %s15, 0
    %p113 = por %p111, %p112
    %p114 = scmp.ne.s32.totalorder %s102, %s103
    %p115 = scmp.eq.s32.totalorder %s16, 1
    %p116 = por %p114, %p115
    %p118 = scmp.ne.s32.totalorder %s103, %s117
    %p119 = scmp.eq.s32.totalorder %s16, 0
    %p120 = por %p118, %p119
    %s121 = ssub.s32 %s17, %s29
    %s122 = ssub.s32 %s18, %s25
    %s123 = sor.u32 %s121, %s122
    %p124 = scmp.eq.s32.totalorder %s123, 0
    %s126 = sadd.s32 %s125, 1
    %s127 = scalar_select %p124, %s125, %s126
    %p130 = pneg %p124
    %p131 = scmp.eq.s32.totalorder %s10, 1
    %p132 = por %p130, %p131
    %p133 = scmp.ne.s32.totalorder %s125, %s128
    %p134 = scmp.eq.s32.totalorder %s10, 0
    %p135 = por %p133, %p134
    %p136 = scmp.ne.s32.totalorder %s125, %s128
    %p137 = scmp.eq.s32.totalorder %s15, 1
    %p138 = por %p136, %p137
    %p139 = scmp.ne.s32.totalorder %s128, %s129
    %p140 = scmp.eq.s32.totalorder %s15, 0
    %p141 = por %p139, %p140
    %p142 = scmp.ne.s32.totalorder %s128, %s129
    %p143 = scmp.eq.s32.totalorder %s16, 1
    %p144 = por %p142, %p143
    %p146 = scmp.ne.s32.totalorder %s129, %s145
    %p147 = scmp.eq.s32.totalorder %s16, 0
    %p148 = por %p146, %p147
    %p149 = scmp.le.s32.totalorder 1, %s10
    %p150 = scmp.lt.s32.totalorder %s10, 3
    %p151 = pnand %p149, %p150
    %p152 = pneg %p151
    // Predicated region
    $region9: #{model_forward.1} parent=5 // pred_check
      _
    $region10: #{model_forward.1} parent=5 // pred_check_branch
      %154 = sbr.rel (%p151) target = $region12
    $region11: #{model_forward.1} parent=5 // pred_region
      %s155 = ssub.s32 %s10, 1
      // Predicated region
      $region13: #{model_forward.1} parent=11 // pred_check
        %p156 = pneg %p71
      $region14: #{model_forward.1} parent=11 // pred_check_branch
        %158 = sbr.rel (%p156) target = $region16
      $region15: #{model_forward.1} parent=11 // pred_region
        _
      $region16: #{model_forward.1} parent=11 // pred_fallthru
        _
      // Predicated region
      $region17: #{model_forward.1} parent=11 // pred_check
        %p159 = pneg %p92
      $region18: #{model_forward.1} parent=11 // pred_check_branch
        %161 = sbr.rel (%p159) target = $region20
      $region19: #{model_forward.1} parent=11 // pred_region
        _
      $region20: #{model_forward.1} parent=11 // pred_fallthru
        _
      // Predicated region
      $region21: #{model_forward.1} parent=11 // pred_check
        %p162 = pneg %p113
      $region22: #{model_forward.1} parent=11 // pred_check_branch
        %164 = sbr.rel (%p162) target = $region24
      $region23: #{model_forward.1} parent=11 // pred_region
        _
      $region24: #{model_forward.1} parent=11 // pred_fallthru
        _
    $region12: #{model_forward.1} parent=5 // pred_fallthru
      _
    %p165 = scmp.lt.s32.totalorder %s10, 2
    // Predicated region
    $region25: #{model_forward.1} parent=5 // pred_check
      %p166 = pneg %p165
    $region26: #{model_forward.1} parent=5 // pred_check_branch
      %168 = sbr.rel (%p166) target = $region28
    $region27: #{model_forward.1} parent=5 // pred_region
      // Predicated region
      $region29: #{model_forward.1} parent=27 // pred_check
        %p169 = pneg %p44
      $region30: #{model_forward.1} parent=27 // pred_check_branch
        %171 = sbr.rel (%p169) target = $region32
      $region31: #{model_forward.1} parent=27 // pred_region
        %s172 = smul.u32 3, %s18
        %p173 = scmp.lt.s32.totalorder %s17, 1
        %s174 = scalar_select %p173, %s17, 1
        %p175 = scmp.lt.s32.totalorder %s172, 2
        %s176 = scalar_select %p175, %s172, 2
        %s177 = smul.addr %s174, 21
        %s178 = sadd.s32 %s176, %s177
        %s179 = smul.addr %s178, 8
        %s180 = scalar_lea.vmem %s0, %s179
        %s181 = smul.u32 3, %s18
      $region32: #{model_forward.1} parent=27 // pred_fallthru
        _
    $region28: #{model_forward.1} parent=5 // pred_fallthru
      _
    %p182 = scmp.le.s32.totalorder 1, %s10
    %p183 = scmp.lt.s32.totalorder %s10, 3
    %p184 = pnand %p182, %p183
    %p185 = pneg %p184
    // Predicated region
    $region33: #{model_forward.1} parent=5 // pred_check
      _
    $region34: #{model_forward.1} parent=5 // pred_check_branch
      %187 = sbr.rel (%p184) target = $region36
    $region35: #{model_forward.1} parent=5 // pred_region
      %s188 = ssub.s32 %s10, 1
      %s189 = smul.u32 3, %s20
      %p190 = scmp.lt.s32.totalorder %s19, 1
      %s191 = scalar_select %p190, %s19, 1
      %p192 = scmp.lt.s32.totalorder %s189, 2
      %s193 = scalar_select %p192, %s189, 2
      %s194 = smul.addr %s191, 21
      %s195 = sadd.s32 %s193, %s194
      %s196 = smul.addr %s195, 8
      %s197 = scalar_lea.vmem %s0, %s196
      %p198 = pneg %p50
      %p199 = pneg %p47
      %p200 = pneg %p71
      %p201 = pneg %p68
      %p202 = pneg %p92
      %p203 = pneg %p89
      %p204 = pneg %p113
      %p205 = pneg %p110
      %p206 = pneg %p141
      %p207 = pneg %p138
      %s208 = smul.u32 3, %s20
      %p209 = scmp.lt.s32.totalorder %s19, 1
      %s210 = scalar_select %p209, %s19, 1
      %p211 = scmp.lt.s32.totalorder %s208, 2
      %s212 = scalar_select %p211, %s208, 2
      %s213 = smul.addr %s210, 3
      %s214 = sadd.s32 %s212, %s213
      %s215 = smul.addr %s214, 8
      %s216 = scalar_lea.vmem %s4, %s215
      %s217 = smul.u32 3, %s20
      %p218 = scmp.lt.s32.totalorder %s19, 1
      %s219 = scalar_select %p218, %s19, 1
      %p220 = scmp.lt.s32.totalorder %s217, 2
      %s221 = scalar_select %p220, %s217, 2
      %s222 = smul.addr %s219, 21
      %s223 = sadd.s32 %s221, %s222
      %s224 = smul.addr %s223, 8
      %s225 = scalar_lea.vmem %s0, %s224
      %s226 = smul.u32 3, %s20
      %s227 = smul.u32 3, %s20
      %p228 = scmp.lt.s32.totalorder %s19, 1
      %s229 = scalar_select %p228, %s19, 1
      %p230 = scmp.lt.s32.totalorder %s227, 2
      %s231 = scalar_select %p230, %s227, 2
      %s232 = smul.addr %s229, 3
      %s233 = sadd.s32 %s231, %s232
      %s234 = smul.addr %s233, 8
      %s235 = scalar_lea.vmem %s4, %s234
      %s236 = smul.u32 3, %s20
      %v237 = vld [vmem:[%s1] sm:$0xff]
      %v238 = vld [vmem:[%s1 + $0x8] sm:$0xff]
      %v239 = vld [vmem:[%s1 + $0x10] sm:$0xff]
      %v240 = vld [vmem:[%s1 + $0x18] sm:$0xff]
      %v241 = vld [vmem:[%s1 + $0x20] sm:$0xff]
      %v242 = vld [vmem:[%s1 + $0x28] sm:$0xff]
      %v243 = vld [vmem:[%s1 + $0x30] sm:$0xff]
      %v244 = vld [vmem:[%s1 + $0x38] sm:$0xff]
      %v245 = vld [vmem:[%s225] sm:$0xff]
      %v246 = vld [vmem:[%s225 + $0x8] sm:$0xff]
      %v247 = vld [vmem:[%s225 + $0x10] sm:$0xff]
      %v248 = vld [vmem:[%s225 + $0x18] sm:$0xff]
      %v249 = vld [vmem:[%s225 + $0x20] sm:$0xff]
      %v250 = vld [vmem:[%s225 + $0x28] sm:$0xff]
      %v251 = vld [vmem:[%s225 + $0x30] sm:$0xff]
      %v252 = vld [vmem:[%s225 + $0x38] sm:$0xff]
      %v253 = vld [vmem:[%s225 + $0x40] sm:$0xff]
      %v254 = vld [vmem:[%s225 + $0x48] sm:$0xff]
      %v255 = vld [vmem:[%s225 + $0x50] sm:$0xff]
      %v256 = vld [vmem:[%s225 + $0x58] sm:$0xff]
      %v257 = vld [vmem:[%s225 + $0x60] sm:$0xff]
      %v258 = vld [vmem:[%s225 + $0x68] sm:$0xff]
      %v259 = vld [vmem:[%s225 + $0x70] sm:$0xff]
      %v260 = vld [vmem:[%s225 + $0x78] sm:$0xff]
      %v261 = vld [vmem:[%s225 + $0x80] sm:$0xff]
      %v262 = vld [vmem:[%s225 + $0x88] sm:$0xff]
      %v263 = vld [vmem:[%s225 + $0x90] sm:$0xff]
      %v264 = vld [vmem:[%s225 + $0x98] sm:$0xff]
      %v265 = vld [vmem:[%s225 + $0xa0] sm:$0xff]
      %vm266 = vcmask 457728
      %v268 = vsel %vm266, %v237, 0
      %v271 = vsel %vm266, %v238, 0
      %v274 = vsel %vm266, %v239, 0
      %v277 = vsel %vm266, %v240, 0
      %v280 = vsel %vm266, %v241, 0
      %v283 = vsel %vm266, %v242, 0
      %v286 = vsel %vm266, %v243, 0
      %v289 = vsel %vm266, %v244, 0
      %291 = vmatpush.msra.mxu0 0.0
      %292 = vmatpush.msra.mxu0 0.0
      %293 = vmatpush.msra.mxu0 0.0
      %294 = vmatpush.msra.mxu0 0.0
      %295 = vmatpush.msra.mxu0 0.0
      %296 = vmatpush.msra.mxu0 0.0
      %297 = vmatpush.msra.mxu0 0.0
      %298 = vmatpush.msra.mxu0 0.0
      %299 = vmatpush.msra.mxu0 0.0
      %300 = vmatpush.msra.mxu0 %v263
      %301 = vmatpush.msra.mxu0 %v260
      %302 = vmatpush.msra.mxu0 %v257
      %303 = vmatpush.msra.mxu0 %v254
      %304 = vmatpush.msra.mxu0 %v251
      %305 = vmatpush.msra.mxu0 %v248
      %306 = vmatpush.msra.mxu0 %v245
      %307 = vmatmul.f32.gmra.mxu0 %v268
      %v308 = vpop.f32.mrf.mxu0
      %v309 = vadd.f32 0.0, %v308
      %310 = vmatmul.f32.gmra.mxu0 %v271
      %v311 = vpop.f32.mrf.mxu0
      %v312 = vadd.f32 0.0, %v311
      %313 = vmatmul.f32.gmra.mxu0 %v274
      %v314 = vpop.f32.mrf.mxu0
      %v315 = vadd.f32 0.0, %v314
      %316 = vmatmul.f32.gmra.mxu0 %v277
      %v317 = vpop.f32.mrf.mxu0
      %v318 = vadd.f32 0.0, %v317
      %319 = vmatmul.f32.gmra.mxu0 %v280
      %v320 = vpop.f32.mrf.mxu0
      %v321 = vadd.f32 0.0, %v320
      %322 = vmatmul.f32.gmra.mxu0 %v283
      %v323 = vpop.f32.mrf.mxu0
      %v324 = vadd.f32 0.0, %v323
      %325 = vmatmul.f32.gmra.mxu0 %v286
      %v326 = vpop.f32.mrf.mxu0
      %v327 = vadd.f32 0.0, %v326
      %328 = vmatmul.f32.gmra.mxu0 %v289
      %v329 = vpop.f32.mrf.mxu0
      %v330 = vadd.f32 0.0, %v329
      %331 = vdwg.mxu0
      %332 = vmatpush.msra.mxu0 0.0
      %333 = vmatpush.msra.mxu0 0.0
      %334 = vmatpush.msra.mxu0 0.0
      %335 = vmatpush.msra.mxu0 0.0
      %336 = vmatpush.msra.mxu0 0.0
      %337 = vmatpush.msra.mxu0 0.0
      %338 = vmatpush.msra.mxu0 0.0
      %339 = vmatpush.msra.mxu0 0.0
      %340 = vmatpush.msra.mxu0 0.0
      %341 = vmatpush.msra.mxu0 %v264
      %342 = vmatpush.msra.mxu0 %v261
      %343 = vmatpush.msra.mxu0 %v258
      %344 = vmatpush.msra.mxu0 %v255
      %345 = vmatpush.msra.mxu0 %v252
      %346 = vmatpush.msra.mxu0 %v249
      %347 = vmatpush.msra.mxu0 %v246
      %348 = vmatmul.f32.gmra.mxu0 %v268
      %v349 = vpop.f32.mrf.mxu0
      %v350 = vadd.f32 0.0, %v349
      %351 = vmatmul.f32.gmra.mxu0 %v271
      %v352 = vpop.f32.mrf.mxu0
      %v353 = vadd.f32 0.0, %v352
      %354 = vmatmul.f32.gmra.mxu0 %v274
      %v355 = vpop.f32.mrf.mxu0
      %v356 = vadd.f32 0.0, %v355
      %357 = vmatmul.f32.gmra.mxu0 %v277
      %v358 = vpop.f32.mrf.mxu0
      %v359 = vadd.f32 0.0, %v358
      %360 = vmatmul.f32.gmra.mxu0 %v280
      %v361 = vpop.f32.mrf.mxu0
      %v362 = vadd.f32 0.0, %v361
      %363 = vmatmul.f32.gmra.mxu0 %v283
      %v364 = vpop.f32.mrf.mxu0
      %v365 = vadd.f32 0.0, %v364
      %366 = vmatmul.f32.gmra.mxu0 %v286
      %v367 = vpop.f32.mrf.mxu0
      %v368 = vadd.f32 0.0, %v367
      %369 = vmatmul.f32.gmra.mxu0 %v289
      %v370 = vpop.f32.mrf.mxu0
      %v371 = vadd.f32 0.0, %v370
      %372 = vdwg.mxu0
      %373 = vmatpush.msra.mxu0 0.0
      %374 = vmatpush.msra.mxu0 0.0
      %375 = vmatpush.msra.mxu0 0.0
      %376 = vmatpush.msra.mxu0 0.0
      %377 = vmatpush.msra.mxu0 0.0
      %378 = vmatpush.msra.mxu0 0.0
      %379 = vmatpush.msra.mxu0 0.0
      %380 = vmatpush.msra.mxu0 0.0
      %381 = vmatpush.msra.mxu0 0.0
      %382 = vmatpush.msra.mxu0 %v265
      %383 = vmatpush.msra.mxu0 %v262
      %384 = vmatpush.msra.mxu0 %v259
      %385 = vmatpush.msra.mxu0 %v256
      %386 = vmatpush.msra.mxu0 %v253
      %387 = vmatpush.msra.mxu0 %v250
      %388 = vmatpush.msra.mxu0 %v247
      %389 = vmatmul.f32.gmra.mxu0 %v268
      %v390 = vpop.f32.mrf.mxu0
      %v391 = vadd.f32 0.0, %v390
      %392 = vmatmul.f32.gmra.mxu0 %v271
      %v393 = vpop.f32.mrf.mxu0
      %v394 = vadd.f32 0.0, %v393
      %395 = vmatmul.f32.gmra.mxu0 %v274
      %v396 = vpop.f32.mrf.mxu0
      %v397 = vadd.f32 0.0, %v396
      %398 = vmatmul.f32.gmra.mxu0 %v277
      %v399 = vpop.f32.mrf.mxu0
      %v400 = vadd.f32 0.0, %v399
      %401 = vmatmul.f32.gmra.mxu0 %v280
      %v402 = vpop.f32.mrf.mxu0
      %v403 = vadd.f32 0.0, %v402
      %404 = vmatmul.f32.gmra.mxu0 %v283
      %v405 = vpop.f32.mrf.mxu0
      %v406 = vadd.f32 0.0, %v405
      %407 = vmatmul.f32.gmra.mxu0 %v286
      %v408 = vpop.f32.mrf.mxu0
      %v409 = vadd.f32 0.0, %v408
      %410 = vmatmul.f32.gmra.mxu0 %v289
      %v411 = vpop.f32.mrf.mxu0
      %v412 = vadd.f32 0.0, %v411
      %413 = vdwg.mxu0
      %v414 = vmax.f32 %v309, 0.0
      %v415 = vmax.f32 %v350, 0.0
      %v416 = vmax.f32 %v391, 0.0
      %v417 = vmax.f32 %v312, 0.0
      %v418 = vmax.f32 %v353, 0.0
      %v419 = vmax.f32 %v394, 0.0
      %v420 = vmax.f32 %v315, 0.0
      %v421 = vmax.f32 %v356, 0.0
      %v422 = vmax.f32 %v397, 0.0
      %v423 = vmax.f32 %v318, 0.0
      %v424 = vmax.f32 %v359, 0.0
      %v425 = vmax.f32 %v400, 0.0
      %v426 = vmax.f32 %v321, 0.0
      %v427 = vmax.f32 %v362, 0.0
      %v428 = vmax.f32 %v403, 0.0
      %v429 = vmax.f32 %v324, 0.0
      %v430 = vmax.f32 %v365, 0.0
      %v431 = vmax.f32 %v406, 0.0
      %v432 = vmax.f32 %v327, 0.0
      %v433 = vmax.f32 %v368, 0.0
      %v434 = vmax.f32 %v409, 0.0
      %v435 = vmax.f32 %v330, 0.0
      %v436 = vmax.f32 %v371, 0.0
      %v437 = vmax.f32 %v412, 0.0
      %v438 = vld [vmem:[%s2] sm:$0xff]
      %v439 = vld [vmem:[%s3] sm:$0xff]
      %441 = vset.pattern.permute.xlu0 0
      %442 = vperm.xlu0 %441, %v439
      %v443 = vpop.permute.xlu0 %442
      %vm445 = vcmask 523264
      %v447 = vsel %vm445, %v438, 0
      %449 = vmatpush.msra.mxu0 0.0
      %450 = vmatpush.msra.mxu0 0.0
      %451 = vmatpush.msra.mxu0 0.0
      %452 = vmatpush.msra.mxu0 0.0
      %453 = vmatpush.msra.mxu0 0.0
      %454 = vmatpush.msra.mxu0 0.0
      %455 = vmatpush.msra.mxu0 0.0
      %456 = vmatpush.msra.mxu0 0.0
      %457 = vmatpush.msra.mxu0 %v435
      %458 = vmatpush.msra.mxu0 %v432
      %459 = vmatpush.msra.mxu0 %v429
      %460 = vmatpush.msra.mxu0 %v426
      %461 = vmatpush.msra.mxu0 %v423
      %462 = vmatpush.msra.mxu0 %v420
      %463 = vmatpush.msra.mxu0 %v417
      %464 = vmatpush.msra.mxu0 %v414
      %465 = vmatmul.f32.gmra.mxu0 %v447
      %v466 = vpop.f32.mrf.mxu0
      %v467 = vadd.f32 %v443, %v466
      %468 = vdwg.mxu0
      %469 = vmatpush.msra.mxu0 0.0
      %470 = vmatpush.msra.mxu0 0.0
      %471 = vmatpush.msra.mxu0 0.0
      %472 = vmatpush.msra.mxu0 0.0
      %473 = vmatpush.msra.mxu0 0.0
      %474 = vmatpush.msra.mxu0 0.0
      %475 = vmatpush.msra.mxu0 0.0
      %476 = vmatpush.msra.mxu0 0.0
      %477 = vmatpush.msra.mxu0 %v436
      %478 = vmatpush.msra.mxu0 %v433
      %479 = vmatpush.msra.mxu0 %v430
      %480 = vmatpush.msra.mxu0 %v427
      %481 = vmatpush.msra.mxu0 %v424
      %482 = vmatpush.msra.mxu0 %v421
      %483 = vmatpush.msra.mxu0 %v418
      %484 = vmatpush.msra.mxu0 %v415
      %485 = vmatmul.f32.gmra.mxu0 %v447
      %v486 = vpop.f32.mrf.mxu0
      %v487 = vadd.f32 %v443, %v486
      %488 = vdwg.mxu0
      %489 = vmatpush.msra.mxu0 0.0
      %490 = vmatpush.msra.mxu0 0.0
      %491 = vmatpush.msra.mxu0 0.0
      %492 = vmatpush.msra.mxu0 0.0
      %493 = vmatpush.msra.mxu0 0.0
      %494 = vmatpush.msra.mxu0 0.0
      %495 = vmatpush.msra.mxu0 0.0
      %496 = vmatpush.msra.mxu0 0.0
      %497 = vmatpush.msra.mxu0 %v437
      %498 = vmatpush.msra.mxu0 %v434
      %499 = vmatpush.msra.mxu0 %v431
      %500 = vmatpush.msra.mxu0 %v428
      %501 = vmatpush.msra.mxu0 %v425
      %502 = vmatpush.msra.mxu0 %v422
      %503 = vmatpush.msra.mxu0 %v419
      %504 = vmatpush.msra.mxu0 %v416
      %505 = vmatmul.f32.gmra.mxu0 %v447
      %v506 = vpop.f32.mrf.mxu0
      %v507 = vadd.f32 %v443, %v506
      %508 = vdwg.mxu0
      %509 = vst [vmem:[%s235] sm:$0xff] %v467
      %510 = vst [vmem:[%s235 + $0x8] sm:$0xff] %v487
      %511 = vst [vmem:[%s235 + $0x10] sm:$0xff] %v507
      %s512 = smul.u32 3, %s20
      %p513 = scmp.lt.s32.totalorder %s19, 1
      %s514 = scalar_select %p513, %s19, 1
      %p515 = scmp.lt.s32.totalorder %s512, 2
      %s516 = scalar_select %p515, %s512, 2
      %s517 = smul.addr %s514, 3
      %s518 = sadd.s32 %s516, %s517
      %s519 = smul.addr %s518, 8
      %s520 = scalar_lea.vmem %s4, %s519
      // Predicated region
      $region37: #{model_forward.1} parent=35 // pred_check
        %p521 = pneg %p138
      $region38: #{model_forward.1} parent=35 // pred_check_branch
        %523 = sbr.rel (%p521) target = $region40
      $region39: #{model_forward.1} parent=35 // pred_region
        %s524 = smul.u32 3, %s20
      $region40: #{model_forward.1} parent=35 // pred_fallthru
        _
    $region36: #{model_forward.1} parent=5 // pred_fallthru
      _
    %p525 = scmp.le.s32.totalorder 2, %s10
    // Predicated region
    $region41: #{model_forward.1} parent=5 // pred_check
      %p526 = pneg %p525
    $region42: #{model_forward.1} parent=5 // pred_check_branch
      %528 = sbr.rel (%p526) target = $region44
    $region43: #{model_forward.1} parent=5 // pred_region
      %s529 = ssub.s32 %s10, 2
      // Predicated region
      $region45: #{model_forward.1} parent=43 // pred_check
        %p530 = pneg %p144
      $region46: #{model_forward.1} parent=43 // pred_check_branch
        %532 = sbr.rel (%p530) target = $region48
      $region47: #{model_forward.1} parent=43 // pred_region
        %s533 = smul.u32 3, %s22
        %p534 = scmp.lt.s32.totalorder %s21, 1
        %s535 = scalar_select %p534, %s21, 1
        %p536 = scmp.lt.s32.totalorder %s533, 2
        %s537 = scalar_select %p536, %s533, 2
        %s538 = smul.addr %s535, 3
        %s539 = sadd.s32 %s537, %s538
        %s540 = smul.addr %s539, 8
        %s541 = scalar_lea.vmem %s4, %s540
      $region48: #{model_forward.1} parent=43 // pred_fallthru
        _
    $region44: #{model_forward.1} parent=5 // pred_fallthru
      _
  $region6: #{model_forward.1} parent=0 // loop_footer
    %s14 = sadd.s32 1, %s10
  $region7: #{model_forward.1} parent=0 // loop_footer_branch
    %9 = sbr.rel target = $region3
  $region8: #{model_forward.1} parent=0 // loop_exit
    _

</llo_original>
